<compile_context>
chip_gen: v7x
topology: tpu7x:2x2x1
jax: 0.10.0
libtpu: 0.0.40
codegen_flags: <defaults>
</compile_context>

<pallas_src>
import functools

import jax
import jax.numpy as jnp
import numpy as np
from jax.experimental import pallas as pl
from jax.experimental.pallas import tpu as pltpu


def _divmod_static(n, d):
    """n // d, n % d for non-negative int32 vectors with a static divisor.

    Uses shift/mask for power-of-two divisors (guaranteed cheap on the VPU)."""
    if d & (d - 1) == 0:
        shift = d.bit_length() - 1
        return n >> shift, n & (d - 1)
    return n // d, n % d


def _sinpe3d_kernel(freq_ref, phase_ref, axis_ref, o_ref, *, Y, Z):
    """Writes one (C, TN) tile of the flattened (B, C, X*Y*Z) encoding.

    freq_ref:  (C, 1) f32   per-channel inverse frequency
    phase_ref: (C, 1) f32   0.0 for sin channels, pi/2 for cos channels
    axis_ref:  (C, 1) int32 0 -> use x position, 1 -> y, 2 -> z
    o_ref:     (C, TN)      output tile (batch dim squeezed by the BlockSpec)
    """
    C, TN = o_ref.shape
    n0 = pl.program_id(1) * TN

    # Flat spatial index for every lane of this tile, decomposed into x,y,z.
    n = jax.lax.broadcasted_iota(jnp.int32, (C, TN), 1) + n0
    xi, r = _divmod_static(n, Y * Z)
    yi, zi = _divmod_static(r, Z)

    # Pick the position used by each channel row (broadcast int32 first so the
    # select conditions are already full-tile shaped).
    axis_b = jnp.broadcast_to(axis_ref[...], (C, TN))
    pos = jnp.where(axis_b == 0, xi, jnp.where(axis_b == 1, yi, zi))

    # sin(pos*inv_freq + phase); phase = pi/2 turns it into the cos channels.
    angle = pos.astype(jnp.float32) * freq_ref[...] + phase_ref[...]
    o_ref[...] = jnp.sin(angle).astype(o_ref.dtype)


def _channel_metadata(orig_ch):
    """Per-output-channel (inv_freq, phase, axis id) implementing the torch recipe."""
    channels = int(np.ceil(orig_ch / 6) * 2)
    if channels % 2:
        channels += 1
    half = channels // 2
    inv_freq = 1.0 / (10000.0 ** (np.arange(0, channels, 2, dtype=np.float32)
                                  / float(channels)))
    c = np.arange(orig_ch)
    axis_id = (c // channels).astype(np.int32)          # 0 / 1 / 2
    j = c % channels
    freq = inv_freq[j % half].astype(np.float32)
    phase = np.where(j >= half, np.pi / 2, 0.0).astype(np.float32)
    return freq, phase, axis_id


def sin_positional_encoding_3d(tensor, *, max_tile_n=8192):
    """Pallas TPU forward of SinPositionalEncoding3D.

    tensor: (B, C, X, Y, Z).  Only its shape/dtype matter (the module's output
    is independent of the input values), so the kernel never reads it.
    Returns: (B, C, X, Y, Z) positional encoding in tensor.dtype.
    """
    B, C, X, Y, Z = tensor.shape
    N = X * Y * Z

    freq, phase, axis_id = _channel_metadata(C)
    freq_a = jnp.asarray(freq).reshape(C, 1)
    phase_a = jnp.asarray(phase).reshape(C, 1)
    axis_a = jnp.asarray(axis_id).reshape(C, 1)

    # Lane tile: the full volume when it fits comfortably in VMEM, otherwise a
    # large multiple of 128 (Pallas masks the ragged final block).
    if N <= max_tile_n:
        tn = N
    else:
        tn = max_tile_n - max_tile_n % 128

    grid = (B, pl.cdiv(N, tn))
    itemsize = jnp.dtype(tensor.dtype).itemsize

    out_flat = pl.pallas_call(
        functools.partial(_sinpe3d_kernel, Y=Y, Z=Z),
        out_shape=jax.ShapeDtypeStruct((B, C, N), tensor.dtype),
        grid_spec=pltpu.PrefetchScalarGridSpec(
            num_scalar_prefetch=0,
            grid=grid,
            in_specs=[
                pl.BlockSpec((C, 1), lambda b, t: (0, 0)),   # freq
                pl.BlockSpec((C, 1), lambda b, t: (0, 0)),   # phase
                pl.BlockSpec((C, 1), lambda b, t: (0, 0)),   # axis id
            ],
            out_specs=pl.BlockSpec((None, C, tn), lambda b, t: (b, 0, t)),
        ),
        compiler_params=pltpu.CompilerParams(
            dimension_semantics=("parallel", "parallel")),
        cost_estimate=pl.CostEstimate(
            flops=4 * B * C * N,
            transcendentals=B * C * N,
            bytes_accessed=B * C * N * itemsize + 3 * C * 4),
    )(freq_a, phase_a, axis_a)

    # Contiguous reshape back to the module's 5-D output layout (free).
    return out_flat.reshape(B, C, X, Y, Z)


def _reference(tensor):
    """Direct jnp transcription of the PyTorch forward (for verification)."""
    B, orig_ch, X, Y, Z = tensor.shape
    channels = int(np.ceil(orig_ch / 6) * 2)
    if channels % 2:
        channels += 1
    inv_freq = 1.0 / (10000.0 ** (jnp.arange(0, channels, 2, dtype=jnp.float32)
                                  / channels))
    pos_x = jnp.arange(X, dtype=jnp.float32)
    pos_y = jnp.arange(Y, dtype=jnp.float32)
    pos_z = jnp.arange(Z, dtype=jnp.float32)
    sx = jnp.einsum("i,j->ij", pos_x, inv_freq)
    sy = jnp.einsum("i,j->ij", pos_y, inv_freq)
    sz = jnp.einsum("i,j->ij", pos_z, inv_freq)
    emb_x = jnp.concatenate([jnp.sin(sx), jnp.cos(sx)], axis=-1)[:, None, None, :]
    emb_y = jnp.concatenate([jnp.sin(sy), jnp.cos(sy)], axis=-1)[None, :, None, :]
    emb_z = jnp.concatenate([jnp.sin(sz), jnp.cos(sz)], axis=-1)[None, None, :, :]
    emb = jnp.concatenate([
        jnp.broadcast_to(emb_x, (X, Y, Z, channels)),
        jnp.broadcast_to(emb_y, (X, Y, Z, channels)),
        jnp.broadcast_to(emb_z, (X, Y, Z, channels)),
    ], axis=-1)[..., :orig_ch]
    emb = jnp.broadcast_to(emb[None], (B, X, Y, Z, orig_ch)).astype(tensor.dtype)
    return jnp.transpose(emb, (0, 4, 1, 2, 3))


if __name__ == "__main__":
    key = jax.random.PRNGKey(0)
    # Small shapes consistent with the module: channels=16 exercises the
    # sin/cos halves of all three (x, y, z) blocks after truncation.
    B, C, X, Y, Z = 2, 16, 8, 8, 8
    x = jax.random.normal(key, (B, C, X, Y, Z), dtype=jnp.float32)

    out = sin_positional_encoding_3d(x)
    out = jax.block_until_ready(out)

    ref = _reference(x)
    assert out.shape == (B, C, X, Y, Z)
    err = float(jnp.max(jnp.abs(out.astype(jnp.float32) - ref.astype(jnp.float32))))
    assert err < 1e-4, f"max abs err {err}"

    print("KERNEL_OK")
</pallas_src>

<mosaic_0001>
module attributes {stable_mosaic.version = 11 : i64} {
  func.func @_sinpe3d_kernel(%arg0: i32, %arg1: i32, %arg2: memref<16x1xf32, #tpu.memory_space<vmem>>, %arg3: memref<16x1xf32, #tpu.memory_space<vmem>>, %arg4: memref<16x1xi32, #tpu.memory_space<vmem>>, %arg5: memref<1x16x512xf32, #tpu.memory_space<vmem>>) attributes {dimension_semantics = [#tpu.dimension_semantics<parallel>, #tpu.dimension_semantics<parallel>], iteration_bounds = array<i64: 2, 1>, scalar_prefetch = 0 : i64, scratch_operands = 0 : i64, tpu.core_type = #tpu.core_type<tc>, window_params = [{pipeline_mode = #tpu.pipeline_mode<synchronous>, transform_indices = @transform_0, window_bounds = array<i64: 16, 1>}, {pipeline_mode = #tpu.pipeline_mode<synchronous>, transform_indices = @transform_1, window_bounds = array<i64: 16, 1>}, {pipeline_mode = #tpu.pipeline_mode<synchronous>, transform_indices = @transform_2, window_bounds = array<i64: 16, 1>}, {transform_indices = @transform_3, window_bounds = array<i64: 1, 16, 512>}]} {
    %c512_i32 = arith.constant 512 : i32
    %0 = arith.muli %arg1, %c512_i32 : i32
    %1 = tpu.iota {dimensions = array<i32: 1>} : vector<16x512xi32>
    %2 = vector.broadcast %0 : i32 to vector<16x512xi32>
    %3 = arith.addi %1, %2 : vector<16x512xi32>
    %c6_i32 = arith.constant 6 : i32
    %4 = vector.broadcast %c6_i32 : i32 to vector<16x512xi32>
    %5 = arith.shrsi %3, %4 : vector<16x512xi32>
    %c63_i32 = arith.constant 63 : i32
    %6 = vector.broadcast %c63_i32 : i32 to vector<16x512xi32>
    %7 = arith.andi %3, %6 : vector<16x512xi32>
    %c3_i32 = arith.constant 3 : i32
    %8 = vector.broadcast %c3_i32 : i32 to vector<16x512xi32>
    %9 = arith.shrsi %7, %8 : vector<16x512xi32>
    %c7_i32 = arith.constant 7 : i32
    %10 = vector.broadcast %c7_i32 : i32 to vector<16x512xi32>
    %11 = arith.andi %7, %10 : vector<16x512xi32>
    %c0 = arith.constant 0 : index
    %c0_0 = arith.constant 0 : index
    %12 = vector.load %arg4[%c0, %c0_0] : memref<16x1xi32, #tpu.memory_space<vmem>>, vector<16x1xi32>
    %13 = vector.shape_cast %12 : vector<16x1xi32> to vector<16x1xi32>
    %14 = vector.broadcast %13 : vector<16x1xi32> to vector<16x512xi32>
    %c0_i32 = arith.constant 0 : i32
    %15 = vector.broadcast %c0_i32 : i32 to vector<16x512xi32>
    %16 = arith.cmpi eq, %14, %15 : vector<16x512xi32>
    %c1_i32 = arith.constant 1 : i32
    %17 = vector.broadcast %c1_i32 : i32 to vector<16x512xi32>
    %18 = arith.cmpi eq, %14, %17 : vector<16x512xi32>
    %19 = arith.select %18, %9, %11 : vector<16x512xi1>, vector<16x512xi32>
    %20 = arith.select %16, %5, %19 : vector<16x512xi1>, vector<16x512xi32>
    %21 = arith.sitofp %20 : vector<16x512xi32> to vector<16x512xf32>
    %c0_1 = arith.constant 0 : index
    %c0_2 = arith.constant 0 : index
    %22 = vector.load %arg2[%c0_1, %c0_2] : memref<16x1xf32, #tpu.memory_space<vmem>>, vector<16x1xf32>
    %23 = vector.broadcast %22 : vector<16x1xf32> to vector<16x512xf32>
    %24 = arith.mulf %21, %23 : vector<16x512xf32>
    %c0_3 = arith.constant 0 : index
    %c0_4 = arith.constant 0 : index
    %25 = vector.load %arg3[%c0_3, %c0_4] : memref<16x1xf32, #tpu.memory_space<vmem>>, vector<16x1xf32>
    %26 = vector.broadcast %25 : vector<16x1xf32> to vector<16x512xf32>
    %27 = arith.addf %24, %26 : vector<16x512xf32>
    %28 = math.sin %27 : vector<16x512xf32>
    %c0_5 = arith.constant 0 : index
    %c0_6 = arith.constant 0 : index
    %c0_7 = arith.constant 0 : index
    %29 = vector.load %arg5[%c0_5, %c0_6, %c0_7] : memref<1x16x512xf32, #tpu.memory_space<vmem>>, vector<1x16x512xf32>
    %30 = vector.shape_cast %29 : vector<1x16x512xf32> to vector<16x512xf32>
    %31 = vector.shape_cast %28 : vector<16x512xf32> to vector<1x16x512xf32>
    tpu.vector_store %arg5[%c0_5, %c0_6, %c0_7], %31 {strides = array<i32>} : memref<1x16x512xf32, #tpu.memory_space<vmem>>, vector<1x16x512xf32>,
    return
  }
  func.func @transform_0(%arg0: i32, %arg1: i32) -> (i32, i32) {
    %c0_i32 = arith.constant 0 : i32
    %c0_i32_0 = arith.constant 0 : i32
    %c0_i32_1 = arith.constant 0 : i32
    return %c0_i32, %c0_i32_0 : i32, i32
  }
  func.func @transform_1(%arg0: i32, %arg1: i32) -> (i32, i32) {
    %c0_i32 = arith.constant 0 : i32
    %c0_i32_0 = arith.constant 0 : i32
    %c0_i32_1 = arith.constant 0 : i32
    return %c0_i32, %c0_i32_0 : i32, i32
  }
  func.func @transform_2(%arg0: i32, %arg1: i32) -> (i32, i32) {
    %c0_i32 = arith.constant 0 : i32
    %c0_i32_0 = arith.constant 0 : i32
    %c0_i32_1 = arith.constant 0 : i32
    return %c0_i32, %c0_i32_0 : i32, i32
  }
  func.func @transform_3(%arg0: i32, %arg1: i32) -> (i32, i32, i32) {
    %c0_i32 = arith.constant 0 : i32
    %c0_i32_0 = arith.constant 0 : i32
    return %arg0, %c0_i32, %arg1 : i32, i32, i32
  }
}

</mosaic_0001>

<llo_original>
// kernel: tpu_custom_call.1
$region0: #{tpu_custom_call.1}
  #allocation0 [shape = 'u32[]', space=smem, size = 0x4, offset = 0x4, fixed_abs, tag = 'smem constant byte address 0x4 - core index']
  #allocation1 [shape = 'u32[144,128]{1,0:T(1,128)}', space=vmem, size = 0x12000, scoped, tag = 'internal scratch']
  %s0 = inlined_call_operand.vmem [shape: f32[16,1], index: 0, kind: input, shape index: {}]
  %s1 = inlined_call_operand.vmem [shape: f32[16,1], index: 1, kind: input, shape index: {}]
  %s2 = inlined_call_operand.vmem [shape: s32[16,1], index: 2, kind: input, shape index: {}]
  %s3 = inlined_call_operand.hbm [shape: f32[2,16,512], index: 3, kind: output, shape index: {}]
  %s4 = sld [smem:[#allocation0]]
  $region45: #{tpu_custom_call.1} parent=0
    _
  %s6 = ssub.s32 1, %s4
  %s7 = scalar_select 0, %s6, %s4
  $region1: #{tpu_custom_call.1} parent=0
    #allocation2 [shape = 'u8[65536]{0}', space=vmem, size = 0x10000, scoped, tag = 'output window, operand 0']
    #allocation3 [shape = 's32[2]{0}', space=sflag, size = 0x8, scoped, tag = 'scoped memory for tpu_custom_call.1']
    %8 = vsyncpa [#allocation3], 0
    %s9 = scalar_lea.sflag [#allocation3], 1
    %10 = vsyncpa %s9, 0
    loop: start=0, step=1, limit=4
    $region2: #{tpu_custom_call.1} parent=1 // loop_pre_header
      _
    $region3: #{tpu_custom_call.1} parent=1 // loop_header
      %s12 = sphi 0, %s16
      %p13 = scmp.ge.s32.totalorder %s12, 4
      %s19 = sphi 0, %s31
      %s20 = sphi 0, %s27
      %s21 = sphi 0, %s19
      %s22 = sphi 0, %s20
      %s23 = sphi 0, %s21
      %s24 = sphi 0, %s22
      %s32 = sphi 0, %s32
      %s34 = sphi 0, %s32
      %s35 = sphi 0, %s34
      %s49 = sphi 0, %s35
      %s53 = sphi 0, %s53
      %s55 = sphi 0, %s53
      %s56 = sphi 0, %s55
      %s70 = sphi 0, %s56
      %s74 = sphi 0, %s74
      %s76 = sphi 0, %s74
      %s77 = sphi 0, %s76
      %s91 = sphi 0, %s77
      %s99 = sphi 0, %s101
      %s102 = sphi 0, %s99
      %s103 = sphi 0, %s102
      %s119 = sphi 0, %s103
    $region4: #{tpu_custom_call.1} parent=1 // loop_header_branch
      %15 = sbr.rel (%p13) target = $region8
    $region5: #{tpu_custom_call.1} parent=1 // loop_body
      %s17 = ssub.s32 %s12, 1
      %s18 = ssub.s32 %s12, 2
      %s25 = sadd.s32 1, %s20
      %p26 = scmp.ge.s32.totalorder %s25, 1
      %s27 = scalar_select %p26, 0, %s25
      %s28 = sadd.s32 1, %s19
      %s29 = scalar_select %p26, %s28, %s19
      %p30 = scmp.ge.s32.totalorder %s29, 2
      %s31 = scalar_select %p30, 0, %s29
      %s33 = sadd.s32 %s32, 1
      %p36 = scmp.eq.s32.totalorder %s12, 1
      %p37 = scmp.ne.s32.totalorder %s32, %s34
      %p38 = scmp.eq.s32.totalorder %s12, 0
      %p39 = por %p37, %p38
      %p40 = scmp.ne.s32.totalorder %s32, %s34
      %p41 = scmp.eq.s32.totalorder %s17, 1
      %p42 = por %p40, %p41
      %p43 = scmp.ne.s32.totalorder %s34, %s35
      %p44 = scmp.eq.s32.totalorder %s17, 0
      %p45 = por %p43, %p44
      %p46 = scmp.ne.s32.totalorder %s34, %s35
      %p47 = scmp.eq.s32.totalorder %s18, 1
      %p48 = por %p46, %p47
      %p50 = scmp.ne.s32.totalorder %s35, %s49
      %p51 = scmp.eq.s32.totalorder %s18, 0
      %p52 = por %p50, %p51
      %s54 = sadd.s32 %s53, 1
      %p57 = scmp.eq.s32.totalorder %s12, 1
      %p58 = scmp.ne.s32.totalorder %s53, %s55
      %p59 = scmp.eq.s32.totalorder %s12, 0
      %p60 = por %p58, %p59
      %p61 = scmp.ne.s32.totalorder %s53, %s55
      %p62 = scmp.eq.s32.totalorder %s17, 1
      %p63 = por %p61, %p62
      %p64 = scmp.ne.s32.totalorder %s55, %s56
      %p65 = scmp.eq.s32.totalorder %s17, 0
      %p66 = por %p64, %p65
      %p67 = scmp.ne.s32.totalorder %s55, %s56
      %p68 = scmp.eq.s32.totalorder %s18, 1
      %p69 = por %p67, %p68
      %p71 = scmp.ne.s32.totalorder %s56, %s70
      %p72 = scmp.eq.s32.totalorder %s18, 0
      %p73 = por %p71, %p72
      %s75 = sadd.s32 %s74, 1
      %p78 = scmp.eq.s32.totalorder %s12, 1
      %p79 = scmp.ne.s32.totalorder %s74, %s76
      %p80 = scmp.eq.s32.totalorder %s12, 0
      %p81 = por %p79, %p80
      %p82 = scmp.ne.s32.totalorder %s74, %s76
      %p83 = scmp.eq.s32.totalorder %s17, 1
      %p84 = por %p82, %p83
      %p85 = scmp.ne.s32.totalorder %s76, %s77
      %p86 = scmp.eq.s32.totalorder %s17, 0
      %p87 = por %p85, %p86
      %p88 = scmp.ne.s32.totalorder %s76, %s77
      %p89 = scmp.eq.s32.totalorder %s18, 1
      %p90 = por %p88, %p89
      %p92 = scmp.ne.s32.totalorder %s77, %s91
      %p93 = scmp.eq.s32.totalorder %s18, 0
      %p94 = por %p92, %p93
      %s95 = ssub.s32 %s19, %s31
      %s96 = ssub.s32 %s20, %s27
      %s97 = sor.u32 %s95, %s96
      %p98 = scmp.eq.s32.totalorder %s97, 0
      %s100 = sadd.s32 %s99, 1
      %s101 = scalar_select %p98, %s99, %s100
      %p104 = pneg %p98
      %p105 = scmp.eq.s32.totalorder %s12, 1
      %p106 = por %p104, %p105
      %p107 = scmp.ne.s32.totalorder %s99, %s102
      %p108 = scmp.eq.s32.totalorder %s12, 0
      %p109 = por %p107, %p108
      %p110 = scmp.ne.s32.totalorder %s99, %s102
      %p111 = scmp.eq.s32.totalorder %s17, 1
      %p112 = por %p110, %p111
      %p113 = scmp.ne.s32.totalorder %s102, %s103
      %p114 = scmp.eq.s32.totalorder %s17, 0
      %p115 = por %p113, %p114
      %p116 = scmp.ne.s32.totalorder %s102, %s103
      %p117 = scmp.eq.s32.totalorder %s18, 1
      %p118 = por %p116, %p117
      %p120 = scmp.ne.s32.totalorder %s103, %s119
      %p121 = scmp.eq.s32.totalorder %s18, 0
      %p122 = por %p120, %p121
      %p123 = scmp.le.s32.totalorder 1, %s12
      %p124 = scmp.lt.s32.totalorder %s12, 3
      %p125 = pnand %p123, %p124
      %p126 = pneg %p125
      // Predicated region
      $region9: #{tpu_custom_call.1} parent=5 // pred_check
        _
      $region10: #{tpu_custom_call.1} parent=5 // pred_check_branch
        %128 = sbr.rel (%p125) target = $region12
      $region11: #{tpu_custom_call.1} parent=5 // pred_region
        %s129 = ssub.s32 %s12, 1
        // Predicated region
        $region13: #{tpu_custom_call.1} parent=11 // pred_check
          %p130 = pneg %p45
        $region14: #{tpu_custom_call.1} parent=11 // pred_check_branch
          %132 = sbr.rel (%p130) target = $region16
        $region15: #{tpu_custom_call.1} parent=11 // pred_region
          _
        $region16: #{tpu_custom_call.1} parent=11 // pred_fallthru
          _
        // Predicated region
        $region17: #{tpu_custom_call.1} parent=11 // pred_check
          %p133 = pneg %p66
        $region18: #{tpu_custom_call.1} parent=11 // pred_check_branch
          %135 = sbr.rel (%p133) target = $region20
        $region19: #{tpu_custom_call.1} parent=11 // pred_region
          _
        $region20: #{tpu_custom_call.1} parent=11 // pred_fallthru
          _
        // Predicated region
        $region21: #{tpu_custom_call.1} parent=11 // pred_check
          %p136 = pneg %p87
        $region22: #{tpu_custom_call.1} parent=11 // pred_check_branch
          %138 = sbr.rel (%p136) target = $region24
        $region23: #{tpu_custom_call.1} parent=11 // pred_region
          _
        $region24: #{tpu_custom_call.1} parent=11 // pred_fallthru
          _
      $region12: #{tpu_custom_call.1} parent=5 // pred_fallthru
        _
      %p139 = scmp.lt.s32.totalorder %s12, 2
      // Predicated region
      $region25: #{tpu_custom_call.1} parent=5 // pred_check
        %p140 = pneg %p139
      $region26: #{tpu_custom_call.1} parent=5 // pred_check_branch
        %142 = sbr.rel (%p140) target = $region28
      $region27: #{tpu_custom_call.1} parent=5 // pred_region
        _
      $region28: #{tpu_custom_call.1} parent=5 // pred_fallthru
        _
      %p143 = scmp.le.s32.totalorder 1, %s12
      %p144 = scmp.lt.s32.totalorder %s12, 3
      %p145 = pnand %p143, %p144
      %p146 = pneg %p145
      // Predicated region
      $region29: #{tpu_custom_call.1} parent=5 // pred_check
        _
      $region30: #{tpu_custom_call.1} parent=5 // pred_check_branch
        %148 = sbr.rel (%p145) target = $region32
      $region31: #{tpu_custom_call.1} parent=5 // pred_region
        %s149 = ssub.s32 %s12, 1
        %p150 = pneg %p45
        %p151 = pneg %p42
        %p152 = pneg %p66
        %p153 = pneg %p63
        %p154 = pneg %p87
        %p155 = pneg %p84
        %p156 = pneg %p115
        %p157 = pneg %p112
        %s158 = sand.u32 %s102, 1
        %s159 = scalar_lea.sflag [#allocation3], %s158
        %s160 = sand.u32 %s102, 1
        %s161 = smul.addr %s160, 64
        %s162 = scalar_lea.vmem [#allocation2], %s161
        %s163 = smul.u32 4, %s22
        %s164 = smul.u32 %s22, 512
        %v165 = vlaneseq
        %v166 = vand.u32 %v165, 127
        %v167 = vadd.s32 %v166, 128
        %v168 = vadd.s32 %v166, 256
        %v169 = vadd.s32 %v166, 384
        %v170 = vstv %s164
        %v171 = vadd.s32 %v166, %v170
        %v172 = vadd.s32 %v167, %v170
        %v173 = vadd.s32 %v168, %v170
        %v174 = vadd.s32 %v169, %v170
        %v175 = vshra.s32 %v171, 6
        %v176 = vshra.s32 %v172, 6
        %v177 = vshra.s32 %v173, 6
        %v178 = vshra.s32 %v174, 6
        %v179 = vand.u32 %v171, 63
        %v180 = vand.u32 %v172, 63
        %v181 = vand.u32 %v173, 63
        %v182 = vand.u32 %v174, 63
        %v183 = vshra.s32 %v179, 3
        %v184 = vshra.s32 %v180, 3
        %v185 = vshra.s32 %v181, 3
        %v186 = vshra.s32 %v182, 3
        %v187 = vand.u32 %v179, 7
        %v188 = vand.u32 %v180, 7
        %v189 = vand.u32 %v181, 7
        %v190 = vand.u32 %v182, 7
        %v191 = vld [vmem:[%s2] sm:$0xff]
        %v192 = vld [vmem:[%s2 + $0x8] sm:$0xff]
        %193 = vset.pattern.permute.xlu0 0
        %194 = vperm.xlu0 %193, %v191
        %v195 = vpop.permute.xlu0 %194
        %196 = vset.pattern.permute.xlu0 0
        %197 = vperm.xlu0 %196, %v192
        %v198 = vpop.permute.xlu0 %197
        %vm199 = vcmp.eq.s32.totalorder %v195, 0
        %vm200 = vcmp.eq.s32.totalorder %v198, 0
        %vm201 = vcmp.eq.s32.totalorder %v195, 1
        %vm202 = vcmp.eq.s32.totalorder %v198, 1
        %v203 = vsel %vm201, %v183, %v187
        %v204 = vsel %vm201, %v184, %v188
        %v205 = vsel %vm201, %v185, %v189
        %v206 = vsel %vm201, %v186, %v190
        %v207 = vsel %vm202, %v183, %v187
        %v208 = vsel %vm202, %v184, %v188
        %v209 = vsel %vm202, %v185, %v189
        %v210 = vsel %vm202, %v186, %v190
        %v211 = vsel %vm199, %v175, %v203
        %v212 = vsel %vm199, %v176, %v204
        %v213 = vsel %vm199, %v177, %v205
        %v214 = vsel %vm199, %v178, %v206
        %v215 = vsel %vm200, %v175, %v207
        %v216 = vsel %vm200, %v176, %v208
        %v217 = vsel %vm200, %v177, %v209
        %v218 = vsel %vm200, %v178, %v210
        %v219 = vcvt.s32.f32 %v211
        %v220 = vcvt.s32.f32 %v212
        %v221 = vcvt.s32.f32 %v213
        %v222 = vcvt.s32.f32 %v214
        %v223 = vcvt.s32.f32 %v215
        %v224 = vcvt.s32.f32 %v216
        %v225 = vcvt.s32.f32 %v217
        %v226 = vcvt.s32.f32 %v218
        %v227 = vld [vmem:[%s0] sm:$0xff]
        %v228 = vld [vmem:[%s0 + $0x8] sm:$0xff]
        %230 = vset.pattern.permute.xlu0 0
        %231 = vperm.xlu0 %230, %v227
        %v232 = vpop.permute.xlu0 %231
        %235 = vset.pattern.permute.xlu0 0
        %236 = vperm.xlu0 %235, %v228
        %v237 = vpop.permute.xlu0 %236
        %v239 = vmul.f32 %v219, %v232
        %v240 = vmul.f32 %v220, %v232
        %v241 = vmul.f32 %v221, %v232
        %v242 = vmul.f32 %v222, %v232
        %v243 = vmul.f32 %v223, %v237
        %v244 = vmul.f32 %v224, %v237
        %v245 = vmul.f32 %v225, %v237
        %v246 = vmul.f32 %v226, %v237
        %v247 = vld [vmem:[%s1] sm:$0xff]
        %v248 = vld [vmem:[%s1 + $0x8] sm:$0xff]
        %250 = vset.pattern.permute.xlu0 0
        %251 = vperm.xlu0 %250, %v247
        %v252 = vpop.permute.xlu0 %251
        %255 = vset.pattern.permute.xlu0 0
        %256 = vperm.xlu0 %255, %v248
        %v257 = vpop.permute.xlu0 %256
        %v259 = vadd.f32 %v239, %v252
        %v260 = vadd.f32 %v240, %v252
        %v261 = vadd.f32 %v241, %v252
        %v262 = vadd.f32 %v242, %v252
        %v263 = vadd.f32 %v243, %v257
        %v264 = vadd.f32 %v244, %v257
        %v265 = vadd.f32 %v245, %v257
        %v266 = vadd.f32 %v246, %v257
        %v267 = vand.u32 2147483647, %v259
        %vm268 = vcmp.le.f32.partialorder %v267, 0.7853982
        %vm269 = vcmp.lt.s32.totalorder %v259, 0
        %v270 = vand.u32 %v259, 2139095040
        %v271 = vshrl.u32 %v270, 23
        %v272 = vsub.s32 %v271, 127
        %v273 = vand.u32 2147483647, %v259
        %v274 = vand.u32 %v273, 8388607
        %v275 = vor.u32 %v274, 8388608
        %v276 = vsub.s32 0, %v275
        %v277 = vadd.s32 %v272, 1
        %vm278 = vcmp.gt.s32.totalorder %v277, 0
        %v279 = vsel %vm278, %v277, 0
        %v280 = vshrl.u32 %v279, 5
        %v281 = vand.u32 %v279, 31
        %v282 = vsub.s32 32, %v281
        %v283 = vshrl.u32 683565275, %v282
        %v284 = vshll.u32 683565275, %v281
        %v285 = vshrl.u32 2475754826, %v282
        %v286 = vor.u32 %v284, %v285
        %v287 = vshll.u32 2475754826, %v281
        %v288 = vshrl.u32 2131351028, %v282
        %v289 = vor.u32 %v287, %v288
        %v290 = vshll.u32 2131351028, %v281
        %v291 = vshrl.u32 2102212464, %v282
        %v292 = vor.u32 %v290, %v291
        %v293 = vshll.u32 2102212464, %v281
        %v294 = vshrl.u32 920167782, %v282
        %v295 = vor.u32 %v293, %v294
        %v296 = vshll.u32 920167782, %v281
        %v297 = vshrl.u32 1326507024, %v282
        %v298 = vor.u32 %v296, %v297
        %vm299 = vcmp.lt.s32.totalorder %v280, 1
        %vm300 = vcmp.lt.s32.totalorder %v280, 2
        %vm301 = vcmp.lt.s32.totalorder %v280, 3
        %vm302 = vcmp.lt.s32.totalorder %v280, 4
        %v303 = vsel %vm299, %v283, %v286
        %v304 = vsel %vm302, %v292, 2102212464
        %v305 = vsel %vm301, %v289, %v304
        %v306 = vsel %vm300, %v303, %v305
        %v307 = vsel %vm299, %v286, %v289
        %v308 = vsel %vm302, %v295, 920167782
        %v309 = vsel %vm301, %v292, %v308
        %v310 = vsel %vm300, %v307, %v309
        %v311 = vsel %vm299, %v289, %v292
        %v312 = vsel %vm302, %v298, 1326507024
        %v313 = vsel %vm301, %v295, %v312
        %v314 = vsel %vm300, %v311, %v313
        %v315 = vshll.u32 %v275, 8
        %v316 = vmul.u32.u64.compose %v315, %v314
        %v317 = vextract.low.u32 %v316
        %v318 = vextract.high.u32 %v316
        %v319 = vmul.u32.u64.compose %v315, %v310
        %v320 = vextract.low.u32 %v319
        %v321 = vextract.high.u32 %v319
        %v322 = vmul.u32 %v315, %v306
        %v323 = vadd.s32 %v318, %v320
        %vm324 = vc.u32 %v318, %v320
        %v325 = vadd.s32 %v321, 1
        %v326 = vsel %vm324, %v325, %v321
        %v327 = vadd.s32 %v322, %v326
        %v328 = vadd.s32 %v327, 536870912
        %v329 = vshrl.u32 %v328, 30
        %v330 = vshll.u32 %v329, 30
        %v331 = vsub.s32 %v327, %v330
        %vm332 = vcmp.lt.s32.totalorder %v331, 0
        %v333 = vsub.s32 0, %v331
        %v334 = vsel %vm332, %v333, %v331
        %v335 = vclz %v334
        %v336 = vsub.s32 %v335, 2
        %vm337 = vcmp.gt.s32.totalorder 0, %v336
        %v338 = vsel %vm337, 0, %v336
        %v339 = vsub.s32 32, %v338
        %v340 = vshll.u32 %v331, %v338
        %v341 = vshrl.u32 %v323, %v339
        %v342 = vor.u32 %v340, %v341
        %v343 = vsub.s32 4294967266, %v338
        %v344 = vadd.s32 %v343, 127
        %v345 = vshll.u32 %v344, 23
        %v346 = vor.u32 4788187, %v345
        %v347 = vand.u32 2147483647, %v346
        %v349 = vcvt.s32.f32 %v342
        %v350 = vmul.f32 %v349, %v347
        %v351 = vxor.u32 %v350, 2147483648
        %v352 = vsel %vm269, %v351, %v350
        %v353 = vsub.s32 4, %v329
        %v354 = vsel %vm269, %v353, %v329
        %v355 = vsel %vm268, %v259, %v352
        %v356 = vsel %vm268, 0, %v354
        %v357 = vcosq.f32.pop %v355
        %v358 = vsinq.f32.pop %v355
        %vm359 = vweird.f32 %v259
        %v360 = vadd.s32 %v356, 3
        %v361 = vand.u32 %v360, 3
        %vm362 = vcmp.lt.s32.totalorder %v361, 2
        %vm363 = vcmp.eq.s32.totalorder %v361, 0
        %v364 = vxor.u32 %v358, 2147483648
        %v365 = vsel %vm363, %v357, %v364
        %vm366 = vcmp.eq.s32.totalorder %v361, 2
        %v367 = vxor.u32 %v357, 2147483648
        %v368 = vsel %vm366, %v367, %v358
        %v369 = vsel %vm362, %v365, %v368
        %v370 = vsel %vm359, nan, %v369
        %v371 = vand.u32 2147483647, %v260
        %vm372 = vcmp.le.f32.partialorder %v371, 0.7853982
        %vm373 = vcmp.lt.s32.totalorder %v260, 0
        %v374 = vand.u32 %v260, 2139095040
        %v375 = vshrl.u32 %v374, 23
        %v376 = vsub.s32 %v375, 127
        %v377 = vand.u32 2147483647, %v260
        %v378 = vand.u32 %v377, 8388607
        %v379 = vor.u32 %v378, 8388608
        %v380 = vsub.s32 0, %v379
        %v381 = vadd.s32 %v376, 1
        %vm382 = vcmp.gt.s32.totalorder %v381, 0
        %v383 = vsel %vm382, %v381, 0
        %v384 = vshrl.u32 %v383, 5
        %v385 = vand.u32 %v383, 31
        %v386 = vsub.s32 32, %v385
        %v387 = vshrl.u32 683565275, %v386
        %v388 = vshll.u32 683565275, %v385
        %v389 = vshrl.u32 2475754826, %v386
        %v390 = vor.u32 %v388, %v389
        %v391 = vshll.u32 2475754826, %v385
        %v392 = vshrl.u32 2131351028, %v386
        %v393 = vor.u32 %v391, %v392
        %v394 = vshll.u32 2131351028, %v385
        %v395 = vshrl.u32 2102212464, %v386
        %v396 = vor.u32 %v394, %v395
        %v397 = vshll.u32 2102212464, %v385
        %v398 = vshrl.u32 920167782, %v386
        %v399 = vor.u32 %v397, %v398
        %v400 = vshll.u32 920167782, %v385
        %v401 = vshrl.u32 1326507024, %v386
        %v402 = vor.u32 %v400, %v401
        %vm403 = vcmp.lt.s32.totalorder %v384, 1
        %vm404 = vcmp.lt.s32.totalorder %v384, 2
        %vm405 = vcmp.lt.s32.totalorder %v384, 3
        %vm406 = vcmp.lt.s32.totalorder %v384, 4
        %v407 = vsel %vm403, %v387, %v390
        %v408 = vsel %vm406, %v396, 2102212464
        %v409 = vsel %vm405, %v393, %v408
        %v410 = vsel %vm404, %v407, %v409
        %v411 = vsel %vm403, %v390, %v393
        %v412 = vsel %vm406, %v399, 920167782
        %v413 = vsel %vm405, %v396, %v412
        %v414 = vsel %vm404, %v411, %v413
        %v415 = vsel %vm403, %v393, %v396
        %v416 = vsel %vm406, %v402, 1326507024
        %v417 = vsel %vm405, %v399, %v416
        %v418 = vsel %vm404, %v415, %v417
        %v419 = vshll.u32 %v379, 8
        %v420 = vmul.u32.u64.compose %v419, %v418
        %v421 = vextract.low.u32 %v420
        %v422 = vextract.high.u32 %v420
        %v423 = vmul.u32.u64.compose %v419, %v414
        %v424 = vextract.low.u32 %v423
        %v425 = vextract.high.u32 %v423
        %v426 = vmul.u32 %v419, %v410
        %v427 = vadd.s32 %v422, %v424
        %vm428 = vc.u32 %v422, %v424
        %v429 = vadd.s32 %v425, 1
        %v430 = vsel %vm428, %v429, %v425
        %v431 = vadd.s32 %v426, %v430
        %v432 = vadd.s32 %v431, 536870912
        %v433 = vshrl.u32 %v432, 30
        %v434 = vshll.u32 %v433, 30
        %v435 = vsub.s32 %v431, %v434
        %vm436 = vcmp.lt.s32.totalorder %v435, 0
        %v437 = vsub.s32 0, %v435
        %v438 = vsel %vm436, %v437, %v435
        %v439 = vclz %v438
        %v440 = vsub.s32 %v439, 2
        %vm441 = vcmp.gt.s32.totalorder 0, %v440
        %v442 = vsel %vm441, 0, %v440
        %v443 = vsub.s32 32, %v442
        %v444 = vshll.u32 %v435, %v442
        %v445 = vshrl.u32 %v427, %v443
        %v446 = vor.u32 %v444, %v445
        %v447 = vsub.s32 4294967266, %v442
        %v448 = vadd.s32 %v447, 127
        %v449 = vshll.u32 %v448, 23
        %v450 = vor.u32 4788187, %v449
        %v451 = vand.u32 2147483647, %v450
        %v453 = vcvt.s32.f32 %v446
        %v454 = vmul.f32 %v453, %v451
        %v455 = vxor.u32 %v454, 2147483648
        %v456 = vsel %vm373, %v455, %v454
        %v457 = vsub.s32 4, %v433
        %v458 = vsel %vm373, %v457, %v433
        %v459 = vsel %vm372, %v260, %v456
        %v460 = vsel %vm372, 0, %v458
        %v461 = vcosq.f32.pop %v459
        %v462 = vsinq.f32.pop %v459
        %vm463 = vweird.f32 %v260
        %v464 = vadd.s32 %v460, 3
        %v465 = vand.u32 %v464, 3
        %vm466 = vcmp.lt.s32.totalorder %v465, 2
        %vm467 = vcmp.eq.s32.totalorder %v465, 0
        %v468 = vxor.u32 %v462, 2147483648
        %v469 = vsel %vm467, %v461, %v468
        %vm470 = vcmp.eq.s32.totalorder %v465, 2
        %v471 = vxor.u32 %v461, 2147483648
        %v472 = vsel %vm470, %v471, %v462
        %v473 = vsel %vm466, %v469, %v472
        %v474 = vsel %vm463, nan, %v473
        %v475 = vand.u32 2147483647, %v261
        %vm476 = vcmp.le.f32.partialorder %v475, 0.7853982
        %vm477 = vcmp.lt.s32.totalorder %v261, 0
        %v478 = vand.u32 %v261, 2139095040
        %v479 = vshrl.u32 %v478, 23
        %v480 = vsub.s32 %v479, 127
        %v481 = vand.u32 2147483647, %v261
        %v482 = vand.u32 %v481, 8388607
        %v483 = vor.u32 %v482, 8388608
        %v484 = vsub.s32 0, %v483
        %v485 = vadd.s32 %v480, 1
        %vm486 = vcmp.gt.s32.totalorder %v485, 0
        %v487 = vsel %vm486, %v485, 0
        %v488 = vshrl.u32 %v487, 5
        %v489 = vand.u32 %v487, 31
        %v490 = vsub.s32 32, %v489
        %v491 = vshrl.u32 683565275, %v490
        %v492 = vshll.u32 683565275, %v489
        %v493 = vshrl.u32 2475754826, %v490
        %v494 = vor.u32 %v492, %v493
        %v495 = vshll.u32 2475754826, %v489
        %v496 = vshrl.u32 2131351028, %v490
        %v497 = vor.u32 %v495, %v496
        %v498 = vshll.u32 2131351028, %v489
        %v499 = vshrl.u32 2102212464, %v490
        %v500 = vor.u32 %v498, %v499
        %v501 = vshll.u32 2102212464, %v489
        %v502 = vshrl.u32 920167782, %v490
        %v503 = vor.u32 %v501, %v502
        %v504 = vshll.u32 920167782, %v489
        %v505 = vshrl.u32 1326507024, %v490
        %v506 = vor.u32 %v504, %v505
        %vm507 = vcmp.lt.s32.totalorder %v488, 1
        %vm508 = vcmp.lt.s32.totalorder %v488, 2
        %vm509 = vcmp.lt.s32.totalorder %v488, 3
        %vm510 = vcmp.lt.s32.totalorder %v488, 4
        %v511 = vsel %vm507, %v491, %v494
        %v512 = vsel %vm510, %v500, 2102212464
        %v513 = vsel %vm509, %v497, %v512
        %v514 = vsel %vm508, %v511, %v513
        %v515 = vsel %vm507, %v494, %v497
        %v516 = vsel %vm510, %v503, 920167782
        %v517 = vsel %vm509, %v500, %v516
        %v518 = vsel %vm508, %v515, %v517
        %v519 = vsel %vm507, %v497, %v500
        %v520 = vsel %vm510, %v506, 1326507024
        %v521 = vsel %vm509, %v503, %v520
        %v522 = vsel %vm508, %v519, %v521
        %v523 = vshll.u32 %v483, 8
        %v524 = vmul.u32.u64.compose %v523, %v522
        %v525 = vextract.low.u32 %v524
        %v526 = vextract.high.u32 %v524
        %v527 = vmul.u32.u64.compose %v523, %v518
        %v528 = vextract.low.u32 %v527
        %v529 = vextract.high.u32 %v527
        %v530 = vmul.u32 %v523, %v514
        %v531 = vadd.s32 %v526, %v528
        %vm532 = vc.u32 %v526, %v528
        %v533 = vadd.s32 %v529, 1
        %v534 = vsel %vm532, %v533, %v529
        %v535 = vadd.s32 %v530, %v534
        %v536 = vadd.s32 %v535, 536870912
        %v537 = vshrl.u32 %v536, 30
        %v538 = vshll.u32 %v537, 30
        %v539 = vsub.s32 %v535, %v538
        %vm540 = vcmp.lt.s32.totalorder %v539, 0
        %v541 = vsub.s32 0, %v539
        %v542 = vsel %vm540, %v541, %v539
        %v543 = vclz %v542
        %v544 = vsub.s32 %v543, 2
        %vm545 = vcmp.gt.s32.totalorder 0, %v544
        %v546 = vsel %vm545, 0, %v544
        %v547 = vsub.s32 32, %v546
        %v548 = vshll.u32 %v539, %v546
        %v549 = vshrl.u32 %v531, %v547
        %v550 = vor.u32 %v548, %v549
        %v551 = vsub.s32 4294967266, %v546
        %v552 = vadd.s32 %v551, 127
        %v553 = vshll.u32 %v552, 23
        %v554 = vor.u32 4788187, %v553
        %v555 = vand.u32 2147483647, %v554
        %v557 = vcvt.s32.f32 %v550
        %v558 = vmul.f32 %v557, %v555
        %v559 = vxor.u32 %v558, 2147483648
        %v560 = vsel %vm477, %v559, %v558
        %v561 = vsub.s32 4, %v537
        %v562 = vsel %vm477, %v561, %v537
        %v563 = vsel %vm476, %v261, %v560
        %v564 = vsel %vm476, 0, %v562
        %v565 = vcosq.f32.pop %v563
        %v566 = vsinq.f32.pop %v563
        %vm567 = vweird.f32 %v261
        %v568 = vadd.s32 %v564, 3
        %v569 = vand.u32 %v568, 3
        %vm570 = vcmp.lt.s32.totalorder %v569, 2
        %vm571 = vcmp.eq.s32.totalorder %v569, 0
        %v572 = vxor.u32 %v566, 2147483648
        %v573 = vsel %vm571, %v565, %v572
        %vm574 = vcmp.eq.s32.totalorder %v569, 2
        %v575 = vxor.u32 %v565, 2147483648
        %v576 = vsel %vm574, %v575, %v566
        %v577 = vsel %vm570, %v573, %v576
        %v578 = vsel %vm567, nan, %v577
        %v579 = vand.u32 2147483647, %v262
        %vm580 = vcmp.le.f32.partialorder %v579, 0.7853982
        %vm581 = vcmp.lt.s32.totalorder %v262, 0
        %v582 = vand.u32 %v262, 2139095040
        %v583 = vshrl.u32 %v582, 23
        %v584 = vsub.s32 %v583, 127
        %v585 = vand.u32 2147483647, %v262
        %v586 = vand.u32 %v585, 8388607
        %v587 = vor.u32 %v586, 8388608
        %v588 = vsub.s32 0, %v587
        %v589 = vadd.s32 %v584, 1
        %vm590 = vcmp.gt.s32.totalorder %v589, 0
        %v591 = vsel %vm590, %v589, 0
        %v592 = vshrl.u32 %v591, 5
        %v593 = vand.u32 %v591, 31
        %v594 = vsub.s32 32, %v593
        %v595 = vshrl.u32 683565275, %v594
        %v596 = vshll.u32 683565275, %v593
        %v597 = vshrl.u32 2475754826, %v594
        %v598 = vor.u32 %v596, %v597
        %v599 = vshll.u32 2475754826, %v593
        %v600 = vshrl.u32 2131351028, %v594
        %v601 = vor.u32 %v599, %v600
        %v602 = vshll.u32 2131351028, %v593
        %v603 = vshrl.u32 2102212464, %v594
        %v604 = vor.u32 %v602, %v603
        %v605 = vshll.u32 2102212464, %v593
        %v606 = vshrl.u32 920167782, %v594
        %v607 = vor.u32 %v605, %v606
        %v608 = vshll.u32 920167782, %v593
        %v609 = vshrl.u32 1326507024, %v594
        %v610 = vor.u32 %v608, %v609
        %vm611 = vcmp.lt.s32.totalorder %v592, 1
        %vm612 = vcmp.lt.s32.totalorder %v592, 2
        %vm613 = vcmp.lt.s32.totalorder %v592, 3
        %vm614 = vcmp.lt.s32.totalorder %v592, 4
        %v615 = vsel %vm611, %v595, %v598
        %v616 = vsel %vm614, %v604, 2102212464
        %v617 = vsel %vm613, %v601, %v616
        %v618 = vsel %vm612, %v615, %v617
        %v619 = vsel %vm611, %v598, %v601
        %v620 = vsel %vm614, %v607, 920167782
        %v621 = vsel %vm613, %v604, %v620
        %v622 = vsel %vm612, %v619, %v621
        %v623 = vsel %vm611, %v601, %v604
        %v624 = vsel %vm614, %v610, 1326507024
        %v625 = vsel %vm613, %v607, %v624
        %v626 = vsel %vm612, %v623, %v625
        %v627 = vshll.u32 %v587, 8
        %v628 = vmul.u32.u64.compose %v627, %v626
        %v629 = vextract.low.u32 %v628
        %v630 = vextract.high.u32 %v628
        %v631 = vmul.u32.u64.compose %v627, %v622
        %v632 = vextract.low.u32 %v631
        %v633 = vextract.high.u32 %v631
        %v634 = vmul.u32 %v627, %v618
        %v635 = vadd.s32 %v630, %v632
        %vm636 = vc.u32 %v630, %v632
        %v637 = vadd.s32 %v633, 1
        %v638 = vsel %vm636, %v637, %v633
        %v639 = vadd.s32 %v634, %v638
        %v640 = vadd.s32 %v639, 536870912
        %v641 = vshrl.u32 %v640, 30
        %v642 = vshll.u32 %v641, 30
        %v643 = vsub.s32 %v639, %v642
        %vm644 = vcmp.lt.s32.totalorder %v643, 0
        %v645 = vsub.s32 0, %v643
        %v646 = vsel %vm644, %v645, %v643
        %v647 = vclz %v646
        %v648 = vsub.s32 %v647, 2
        %vm649 = vcmp.gt.s32.totalorder 0, %v648
        %v650 = vsel %vm649, 0, %v648
        %v651 = vsub.s32 32, %v650
        %v652 = vshll.u32 %v643, %v650
        %v653 = vshrl.u32 %v635, %v651
        %v654 = vor.u32 %v652, %v653
        %v655 = vsub.s32 4294967266, %v650
        %v656 = vadd.s32 %v655, 127
        %v657 = vshll.u32 %v656, 23
        %v658 = vor.u32 4788187, %v657
        %v659 = vand.u32 2147483647, %v658
        %v661 = vcvt.s32.f32 %v654
        %v662 = vmul.f32 %v661, %v659
        %v663 = vxor.u32 %v662, 2147483648
        %v664 = vsel %vm581, %v663, %v662
        %v665 = vsub.s32 4, %v641
        %v666 = vsel %vm581, %v665, %v641
        %v667 = vsel %vm580, %v262, %v664
        %v668 = vsel %vm580, 0, %v666
        %v669 = vcosq.f32.pop %v667
        %v670 = vsinq.f32.pop %v667
        %vm671 = vweird.f32 %v262
        %v672 = vadd.s32 %v668, 3
        %v673 = vand.u32 %v672, 3
        %vm674 = vcmp.lt.s32.totalorder %v673, 2
        %vm675 = vcmp.eq.s32.totalorder %v673, 0
        %v676 = vxor.u32 %v670, 2147483648
        %v677 = vsel %vm675, %v669, %v676
        %vm678 = vcmp.eq.s32.totalorder %v673, 2
        %v679 = vxor.u32 %v669, 2147483648
        %v680 = vsel %vm678, %v679, %v670
        %v681 = vsel %vm674, %v677, %v680
        %v682 = vsel %vm671, nan, %v681
        %v683 = vand.u32 2147483647, %v263
        %vm684 = vcmp.le.f32.partialorder %v683, 0.7853982
        %vm685 = vcmp.lt.s32.totalorder %v263, 0
        %v686 = vand.u32 %v263, 2139095040
        %v687 = vshrl.u32 %v686, 23
        %v688 = vsub.s32 %v687, 127
        %v689 = vand.u32 2147483647, %v263
        %v690 = vand.u32 %v689, 8388607
        %v691 = vor.u32 %v690, 8388608
        %v692 = vsub.s32 0, %v691
        %v693 = vadd.s32 %v688, 1
        %vm694 = vcmp.gt.s32.totalorder %v693, 0
        %v695 = vsel %vm694, %v693, 0
        %v696 = vshrl.u32 %v695, 5
        %v697 = vand.u32 %v695, 31
        %v698 = vsub.s32 32, %v697
        %v699 = vshrl.u32 683565275, %v698
        %v700 = vshll.u32 683565275, %v697
        %v701 = vshrl.u32 2475754826, %v698
        %v702 = vor.u32 %v700, %v701
        %v703 = vshll.u32 2475754826, %v697
        %v704 = vshrl.u32 2131351028, %v698
        %v705 = vor.u32 %v703, %v704
        %v706 = vshll.u32 2131351028, %v697
        %v707 = vshrl.u32 2102212464, %v698
        %v708 = vor.u32 %v706, %v707
        %v709 = vshll.u32 2102212464, %v697
        %v710 = vshrl.u32 920167782, %v698
        %v711 = vor.u32 %v709, %v710
        %v712 = vshll.u32 920167782, %v697
        %v713 = vshrl.u32 1326507024, %v698
        %v714 = vor.u32 %v712, %v713
        %vm715 = vcmp.lt.s32.totalorder %v696, 1
        %vm716 = vcmp.lt.s32.totalorder %v696, 2
        %vm717 = vcmp.lt.s32.totalorder %v696, 3
        %vm718 = vcmp.lt.s32.totalorder %v696, 4
        %v719 = vsel %vm715, %v699, %v702
        %v720 = vsel %vm718, %v708, 2102212464
        %v721 = vsel %vm717, %v705, %v720
        %v722 = vsel %vm716, %v719, %v721
        %v723 = vsel %vm715, %v702, %v705
        %v724 = vsel %vm718, %v711, 920167782
        %v725 = vsel %vm717, %v708, %v724
        %v726 = vsel %vm716, %v723, %v725
        %v727 = vsel %vm715, %v705, %v708
        %v728 = vsel %vm718, %v714, 1326507024
        %v729 = vsel %vm717, %v711, %v728
        %v730 = vsel %vm716, %v727, %v729
        %v731 = vshll.u32 %v691, 8
        %v732 = vmul.u32.u64.compose %v731, %v730
        %v733 = vextract.low.u32 %v732
        %v734 = vextract.high.u32 %v732
        %v735 = vmul.u32.u64.compose %v731, %v726
        %v736 = vextract.low.u32 %v735
        %v737 = vextract.high.u32 %v735
        %v738 = vmul.u32 %v731, %v722
        %v739 = vadd.s32 %v734, %v736
        %vm740 = vc.u32 %v734, %v736
        %v741 = vadd.s32 %v737, 1
        %v742 = vsel %vm740, %v741, %v737
        %v743 = vadd.s32 %v738, %v742
        %v744 = vadd.s32 %v743, 536870912
        %v745 = vshrl.u32 %v744, 30
        %v746 = vshll.u32 %v745, 30
        %v747 = vsub.s32 %v743, %v746
        %vm748 = vcmp.lt.s32.totalorder %v747, 0
        %v749 = vsub.s32 0, %v747
        %v750 = vsel %vm748, %v749, %v747
        %v751 = vclz %v750
        %v752 = vsub.s32 %v751, 2
        %vm753 = vcmp.gt.s32.totalorder 0, %v752
        %v754 = vsel %vm753, 0, %v752
        %v755 = vsub.s32 32, %v754
        %v756 = vshll.u32 %v747, %v754
        %v757 = vshrl.u32 %v739, %v755
        %v758 = vor.u32 %v756, %v757
        %v759 = vsub.s32 4294967266, %v754
        %v760 = vadd.s32 %v759, 127
        %v761 = vshll.u32 %v760, 23
        %v762 = vor.u32 4788187, %v761
        %v763 = vand.u32 2147483647, %v762
        %v765 = vcvt.s32.f32 %v758
        %v766 = vmul.f32 %v765, %v763
        %v767 = vxor.u32 %v766, 2147483648
        %v768 = vsel %vm685, %v767, %v766
        %v769 = vsub.s32 4, %v745
        %v770 = vsel %vm685, %v769, %v745
        %v771 = vsel %vm684, %v263, %v768
        %v772 = vsel %vm684, 0, %v770
        %v773 = vcosq.f32.pop %v771
        %v774 = vsinq.f32.pop %v771
        %vm775 = vweird.f32 %v263
        %v776 = vadd.s32 %v772, 3
        %v777 = vand.u32 %v776, 3
        %vm778 = vcmp.lt.s32.totalorder %v777, 2
        %vm779 = vcmp.eq.s32.totalorder %v777, 0
        %v780 = vxor.u32 %v774, 2147483648
        %v781 = vsel %vm779, %v773, %v780
        %vm782 = vcmp.eq.s32.totalorder %v777, 2
        %v783 = vxor.u32 %v773, 2147483648
        %v784 = vsel %vm782, %v783, %v774
        %v785 = vsel %vm778, %v781, %v784
        %v786 = vsel %vm775, nan, %v785
        %v787 = vand.u32 2147483647, %v264
        %vm788 = vcmp.le.f32.partialorder %v787, 0.7853982
        %vm789 = vcmp.lt.s32.totalorder %v264, 0
        %v790 = vand.u32 %v264, 2139095040
        %v791 = vshrl.u32 %v790, 23
        %v792 = vsub.s32 %v791, 127
        %v793 = vand.u32 2147483647, %v264
        %v794 = vand.u32 %v793, 8388607
        %v795 = vor.u32 %v794, 8388608
        %v796 = vsub.s32 0, %v795
        %v797 = vadd.s32 %v792, 1
        %vm798 = vcmp.gt.s32.totalorder %v797, 0
        %v799 = vsel %vm798, %v797, 0
        %v800 = vshrl.u32 %v799, 5
        %v801 = vand.u32 %v799, 31
        %v802 = vsub.s32 32, %v801
        %v803 = vshrl.u32 683565275, %v802
        %v804 = vshll.u32 683565275, %v801
        %v805 = vshrl.u32 2475754826, %v802
        %v806 = vor.u32 %v804, %v805
        %v807 = vshll.u32 2475754826, %v801
        %v808 = vshrl.u32 2131351028, %v802
        %v809 = vor.u32 %v807, %v808
        %v810 = vshll.u32 2131351028, %v801
        %v811 = vshrl.u32 2102212464, %v802
        %v812 = vor.u32 %v810, %v811
        %v813 = vshll.u32 2102212464, %v801
        %v814 = vshrl.u32 920167782, %v802
        %v815 = vor.u32 %v813, %v814
        %v816 = vshll.u32 920167782, %v801
        %v817 = vshrl.u32 1326507024, %v802
        %v818 = vor.u32 %v816, %v817
        %vm819 = vcmp.lt.s32.totalorder %v800, 1
        %vm820 = vcmp.lt.s32.totalorder %v800, 2
        %vm821 = vcmp.lt.s32.totalorder %v800, 3
        %vm822 = vcmp.lt.s32.totalorder %v800, 4
        %v823 = vsel %vm819, %v803, %v806
        %v824 = vsel %vm822, %v812, 2102212464
        %v825 = vsel %vm821, %v809, %v824
        %v826 = vsel %vm820, %v823, %v825
        %v827 = vsel %vm819, %v806, %v809
        %v828 = vsel %vm822, %v815, 920167782
        %v829 = vsel %vm821, %v812, %v828
        %v830 = vsel %vm820, %v827, %v829
        %v831 = vsel %vm819, %v809, %v812
        %v832 = vsel %vm822, %v818, 1326507024
        %v833 = vsel %vm821, %v815, %v832
        %v834 = vsel %vm820, %v831, %v833
        %v835 = vshll.u32 %v795, 8
        %v836 = vmul.u32.u64.compose %v835, %v834
        %v837 = vextract.low.u32 %v836
        %v838 = vextract.high.u32 %v836
        %v839 = vmul.u32.u64.compose %v835, %v830
        %v840 = vextract.low.u32 %v839
        %v841 = vextract.high.u32 %v839
        %v842 = vmul.u32 %v835, %v826
        %v843 = vadd.s32 %v838, %v840
        %vm844 = vc.u32 %v838, %v840
        %v845 = vadd.s32 %v841, 1
        %v846 = vsel %vm844, %v845, %v841
        %v847 = vadd.s32 %v842, %v846
        %v848 = vadd.s32 %v847, 536870912
        %v849 = vshrl.u32 %v848, 30
        %v850 = vshll.u32 %v849, 30
        %v851 = vsub.s32 %v847, %v850
        %vm852 = vcmp.lt.s32.totalorder %v851, 0
        %v853 = vsub.s32 0, %v851
        %v854 = vsel %vm852, %v853, %v851
        %v855 = vclz %v854
        %v856 = vsub.s32 %v855, 2
        %vm857 = vcmp.gt.s32.totalorder 0, %v856
        %v858 = vsel %vm857, 0, %v856
        %v859 = vsub.s32 32, %v858
        %v860 = vshll.u32 %v851, %v858
        %v861 = vshrl.u32 %v843, %v859
        %v862 = vor.u32 %v860, %v861
        %v863 = vsub.s32 4294967266, %v858
        %v864 = vadd.s32 %v863, 127
        %v865 = vshll.u32 %v864, 23
        %v866 = vor.u32 4788187, %v865
        %v867 = vand.u32 2147483647, %v866
        %v869 = vcvt.s32.f32 %v862
        %v870 = vmul.f32 %v869, %v867
        %v871 = vxor.u32 %v870, 2147483648
        %v872 = vsel %vm789, %v871, %v870
        %v873 = vsub.s32 4, %v849
        %v874 = vsel %vm789, %v873, %v849
        %v875 = vsel %vm788, %v264, %v872
        %v876 = vsel %vm788, 0, %v874
        %v877 = vcosq.f32.pop %v875
        %v878 = vsinq.f32.pop %v875
        %vm879 = vweird.f32 %v264
        %v880 = vadd.s32 %v876, 3
        %v881 = vand.u32 %v880, 3
        %vm882 = vcmp.lt.s32.totalorder %v881, 2
        %vm883 = vcmp.eq.s32.totalorder %v881, 0
        %v884 = vxor.u32 %v878, 2147483648
        %v885 = vsel %vm883, %v877, %v884
        %vm886 = vcmp.eq.s32.totalorder %v881, 2
        %v887 = vxor.u32 %v877, 2147483648
        %v888 = vsel %vm886, %v887, %v878
        %v889 = vsel %vm882, %v885, %v888
        %v890 = vsel %vm879, nan, %v889
        %v891 = vand.u32 2147483647, %v265
        %vm892 = vcmp.le.f32.partialorder %v891, 0.7853982
        %vm893 = vcmp.lt.s32.totalorder %v265, 0
        %v894 = vand.u32 %v265, 2139095040
        %v895 = vshrl.u32 %v894, 23
        %v896 = vsub.s32 %v895, 127
        %v897 = vand.u32 2147483647, %v265
        %v898 = vand.u32 %v897, 8388607
        %v899 = vor.u32 %v898, 8388608
        %v900 = vsub.s32 0, %v899
        %v901 = vadd.s32 %v896, 1
        %vm902 = vcmp.gt.s32.totalorder %v901, 0
        %v903 = vsel %vm902, %v901, 0
        %v904 = vshrl.u32 %v903, 5
        %v905 = vand.u32 %v903, 31
        %v906 = vsub.s32 32, %v905
        %v907 = vshrl.u32 683565275, %v906
        %v908 = vshll.u32 683565275, %v905
        %v909 = vshrl.u32 2475754826, %v906
        %v910 = vor.u32 %v908, %v909
        %v911 = vshll.u32 2475754826, %v905
        %v912 = vshrl.u32 2131351028, %v906
        %v913 = vor.u32 %v911, %v912
        %v914 = vshll.u32 2131351028, %v905
        %v915 = vshrl.u32 2102212464, %v906
        %v916 = vor.u32 %v914, %v915
        %v917 = vshll.u32 2102212464, %v905
        %v918 = vshrl.u32 920167782, %v906
        %v919 = vor.u32 %v917, %v918
        %v920 = vshll.u32 920167782, %v905
        %v921 = vshrl.u32 1326507024, %v906
        %v922 = vor.u32 %v920, %v921
        %vm923 = vcmp.lt.s32.totalorder %v904, 1
        %vm924 = vcmp.lt.s32.totalorder %v904, 2
        %vm925 = vcmp.lt.s32.totalorder %v904, 3
        %vm926 = vcmp.lt.s32.totalorder %v904, 4
        %v927 = vsel %vm923, %v907, %v910
        %v928 = vsel %vm926, %v916, 2102212464
        %v929 = vsel %vm925, %v913, %v928
        %v930 = vsel %vm924, %v927, %v929
        %v931 = vsel %vm923, %v910, %v913
        %v932 = vsel %vm926, %v919, 920167782
        %v933 = vsel %vm925, %v916, %v932
        %v934 = vsel %vm924, %v931, %v933
        %v935 = vsel %vm923, %v913, %v916
        %v936 = vsel %vm926, %v922, 1326507024
        %v937 = vsel %vm925, %v919, %v936
        %v938 = vsel %vm924, %v935, %v937
        %v939 = vshll.u32 %v899, 8
        %v940 = vmul.u32.u64.compose %v939, %v938
        %v941 = vextract.low.u32 %v940
        %v942 = vextract.high.u32 %v940
        %v943 = vmul.u32.u64.compose %v939, %v934
        %v944 = vextract.low.u32 %v943
        %v945 = vextract.high.u32 %v943
        %v946 = vmul.u32 %v939, %v930
        %v947 = vadd.s32 %v942, %v944
        %vm948 = vc.u32 %v942, %v944
        %v949 = vadd.s32 %v945, 1
        %v950 = vsel %vm948, %v949, %v945
        %v951 = vadd.s32 %v946, %v950
        %v952 = vadd.s32 %v951, 536870912
        %v953 = vshrl.u32 %v952, 30
        %v954 = vshll.u32 %v953, 30
        %v955 = vsub.s32 %v951, %v954
        %vm956 = vcmp.lt.s32.totalorder %v955, 0
        %v957 = vsub.s32 0, %v955
        %v958 = vsel %vm956, %v957, %v955
        %v959 = vclz %v958
        %v960 = vsub.s32 %v959, 2
        %vm961 = vcmp.gt.s32.totalorder 0, %v960
        %v962 = vsel %vm961, 0, %v960
        %v963 = vsub.s32 32, %v962
        %v964 = vshll.u32 %v955, %v962
        %v965 = vshrl.u32 %v947, %v963
        %v966 = vor.u32 %v964, %v965
        %v967 = vsub.s32 4294967266, %v962
        %v968 = vadd.s32 %v967, 127
        %v969 = vshll.u32 %v968, 23
        %v970 = vor.u32 4788187, %v969
        %v971 = vand.u32 2147483647, %v970
        %v973 = vcvt.s32.f32 %v966
        %v974 = vmul.f32 %v973, %v971
        %v975 = vxor.u32 %v974, 2147483648
        %v976 = vsel %vm893, %v975, %v974
        %v977 = vsub.s32 4, %v953
        %v978 = vsel %vm893, %v977, %v953
        %v979 = vsel %vm892, %v265, %v976
        %v980 = vsel %vm892, 0, %v978
        %v981 = vcosq.f32.pop %v979
        %v982 = vsinq.f32.pop %v979
        %vm983 = vweird.f32 %v265
        %v984 = vadd.s32 %v980, 3
        %v985 = vand.u32 %v984, 3
        %vm986 = vcmp.lt.s32.totalorder %v985, 2
        %vm987 = vcmp.eq.s32.totalorder %v985, 0
        %v988 = vxor.u32 %v982, 2147483648
        %v989 = vsel %vm987, %v981, %v988
        %vm990 = vcmp.eq.s32.totalorder %v985, 2
        %v991 = vxor.u32 %v981, 2147483648
        %v992 = vsel %vm990, %v991, %v982
        %v993 = vsel %vm986, %v989, %v992
        %v994 = vsel %vm983, nan, %v993
        %v995 = vand.u32 2147483647, %v266
        %vm996 = vcmp.le.f32.partialorder %v995, 0.7853982
        %vm997 = vcmp.lt.s32.totalorder %v266, 0
        %v998 = vand.u32 %v266, 2139095040
        %v999 = vshrl.u32 %v998, 23
        %v1000 = vsub.s32 %v999, 127
        %v1001 = vand.u32 2147483647, %v266
        %v1002 = vand.u32 %v1001, 8388607
        %v1003 = vor.u32 %v1002, 8388608
        %v1004 = vsub.s32 0, %v1003
        %v1005 = vadd.s32 %v1000, 1
        %vm1006 = vcmp.gt.s32.totalorder %v1005, 0
        %v1007 = vsel %vm1006, %v1005, 0
        %v1008 = vshrl.u32 %v1007, 5
        %v1009 = vand.u32 %v1007, 31
        %v1010 = vsub.s32 32, %v1009
        %v1011 = vshrl.u32 683565275, %v1010
        %v1012 = vshll.u32 683565275, %v1009
        %v1013 = vshrl.u32 2475754826, %v1010
        %v1014 = vor.u32 %v1012, %v1013
        %v1015 = vshll.u32 2475754826, %v1009
        %v1016 = vshrl.u32 2131351028, %v1010
        %v1017 = vor.u32 %v1015, %v1016
        %v1018 = vshll.u32 2131351028, %v1009
        %v1019 = vshrl.u32 2102212464, %v1010
        %v1020 = vor.u32 %v1018, %v1019
        %v1021 = vshll.u32 2102212464, %v1009
        %v1022 = vshrl.u32 920167782, %v1010
        %v1023 = vor.u32 %v1021, %v1022
        %v1024 = vshll.u32 920167782, %v1009
        %v1025 = vshrl.u32 1326507024, %v1010
        %v1026 = vor.u32 %v1024, %v1025
        %vm1027 = vcmp.lt.s32.totalorder %v1008, 1
        %vm1028 = vcmp.lt.s32.totalorder %v1008, 2
        %vm1029 = vcmp.lt.s32.totalorder %v1008, 3
        %vm1030 = vcmp.lt.s32.totalorder %v1008, 4
        %v1031 = vsel %vm1027, %v1011, %v1014
        %v1032 = vsel %vm1030, %v1020, 2102212464
        %v1033 = vsel %vm1029, %v1017, %v1032
        %v1034 = vsel %vm1028, %v1031, %v1033
        %v1035 = vsel %vm1027, %v1014, %v1017
        %v1036 = vsel %vm1030, %v1023, 920167782
        %v1037 = vsel %vm1029, %v1020, %v1036
        %v1038 = vsel %vm1028, %v1035, %v1037
        %v1039 = vsel %vm1027, %v1017, %v1020
        %v1040 = vsel %vm1030, %v1026, 1326507024
        %v1041 = vsel %vm1029, %v1023, %v1040
        %v1042 = vsel %vm1028, %v1039, %v1041
        %v1043 = vshll.u32 %v1003, 8
        %v1044 = vmul.u32.u64.compose %v1043, %v1042
        %v1045 = vextract.low.u32 %v1044
        %v1046 = vextract.high.u32 %v1044
        %v1047 = vmul.u32.u64.compose %v1043, %v1038
        %v1048 = vextract.low.u32 %v1047
        %v1049 = vextract.high.u32 %v1047
        %v1050 = vmul.u32 %v1043, %v1034
        %v1051 = vadd.s32 %v1046, %v1048
        %vm1052 = vc.u32 %v1046, %v1048
        %v1053 = vadd.s32 %v1049, 1
        %v1054 = vsel %vm1052, %v1053, %v1049
        %v1055 = vadd.s32 %v1050, %v1054
        %v1056 = vadd.s32 %v1055, 536870912
        %v1057 = vshrl.u32 %v1056, 30
        %v1058 = vshll.u32 %v1057, 30
        %v1059 = vsub.s32 %v1055, %v1058
        %vm1060 = vcmp.lt.s32.totalorder %v1059, 0
        %v1061 = vsub.s32 0, %v1059
        %v1062 = vsel %vm1060, %v1061, %v1059
        %v1063 = vclz %v1062
        %v1064 = vsub.s32 %v1063, 2
        %vm1065 = vcmp.gt.s32.totalorder 0, %v1064
        %v1066 = vsel %vm1065, 0, %v1064
        %v1067 = vsub.s32 32, %v1066
        %v1068 = vshll.u32 %v1059, %v1066
        %v1069 = vshrl.u32 %v1051, %v1067
        %v1070 = vor.u32 %v1068, %v1069
        %v1071 = vsub.s32 4294967266, %v1066
        %v1072 = vadd.s32 %v1071, 127
        %v1073 = vshll.u32 %v1072, 23
        %v1074 = vor.u32 4788187, %v1073
        %v1075 = vand.u32 2147483647, %v1074
        %v1077 = vcvt.s32.f32 %v1070
        %v1078 = vmul.f32 %v1077, %v1075
        %v1079 = vxor.u32 %v1078, 2147483648
        %v1080 = vsel %vm997, %v1079, %v1078
        %v1081 = vsub.s32 4, %v1057
        %v1082 = vsel %vm997, %v1081, %v1057
        %v1083 = vsel %vm996, %v266, %v1080
        %v1084 = vsel %vm996, 0, %v1082
        %v1085 = vcosq.f32.pop %v1083
        %v1086 = vsinq.f32.pop %v1083
        %vm1087 = vweird.f32 %v266
        %v1088 = vadd.s32 %v1084, 3
        %v1089 = vand.u32 %v1088, 3
        %vm1090 = vcmp.lt.s32.totalorder %v1089, 2
        %vm1091 = vcmp.eq.s32.totalorder %v1089, 0
        %v1092 = vxor.u32 %v1086, 2147483648
        %v1093 = vsel %vm1091, %v1085, %v1092
        %vm1094 = vcmp.eq.s32.totalorder %v1089, 2
        %v1095 = vxor.u32 %v1085, 2147483648
        %v1096 = vsel %vm1094, %v1095, %v1086
        %v1097 = vsel %vm1090, %v1093, %v1096
        %v1098 = vsel %vm1087, nan, %v1097
        %1099 = vst [vmem:[%s162] sm:$0xff] %v370
        %1100 = vst [vmem:[%s162 + $0x8] sm:$0xff] %v474
        %1101 = vst [vmem:[%s162 + $0x10] sm:$0xff] %v578
        %1102 = vst [vmem:[%s162 + $0x18] sm:$0xff] %v682
        %1103 = vst [vmem:[%s162 + $0x20] sm:$0xff] %v786
        %1104 = vst [vmem:[%s162 + $0x28] sm:$0xff] %v890
        %1105 = vst [vmem:[%s162 + $0x30] sm:$0xff] %v994
        %1106 = vst [vmem:[%s162 + $0x38] sm:$0xff] %v1098
        %s1107 = sand.u32 %s102, 1
        %s1108 = scalar_lea.sflag [#allocation3], %s1107
        %s1109 = sand.u32 %s102, 1
        %s1110 = smul.addr %s1109, 64
        %s1111 = scalar_lea.vmem [#allocation2], %s1110
        // Predicated region
        $region33: #{tpu_custom_call.1} parent=31 // pred_check
          %p1112 = pneg %p112
        $region34: #{tpu_custom_call.1} parent=31 // pred_check_branch
          %1114 = sbr.rel (%p1112) target = $region36
        $region35: #{tpu_custom_call.1} parent=31 // pred_region
          %s1115 = smul.u32 4, %s22
          %s1117 = ssub.s32 1024, 1024
          %1118 = vsyncadd %s1108, %s1117
          %s1119 = smul.addr %s21, 8
          %s1120 = sadd.s32 %s1115, %s1119
          %s1121 = smul.addr %s1120, 128
          %s1122 = scalar_lea.hbm %s3, %s1121
          %s1123 = sshll.u32 %s1111, 4
          %s1124 = int_to_ptr.vmem [resolvable:$true] %s1123
          %1129 = dma.vmem_to_hbm [thread:$0]  %s1124, 1024, %s1122, %s1108, 512, 512, 32
        $region36: #{tpu_custom_call.1} parent=31 // pred_fallthru
          _
      $region32: #{tpu_custom_call.1} parent=5 // pred_fallthru
        _
      %p1130 = scmp.le.s32.totalorder 2, %s12
      // Predicated region
      $region37: #{tpu_custom_call.1} parent=5 // pred_check
        %p1131 = pneg %p1130
      $region38: #{tpu_custom_call.1} parent=5 // pred_check_branch
        %1133 = sbr.rel (%p1131) target = $region40
      $region39: #{tpu_custom_call.1} parent=5 // pred_region
        %s1134 = ssub.s32 %s12, 2
        // Predicated region
        $region41: #{tpu_custom_call.1} parent=39 // pred_check
          %p1135 = pneg %p118
        $region42: #{tpu_custom_call.1} parent=39 // pred_check_branch
          %1137 = sbr.rel (%p1135) target = $region44
        $region43: #{tpu_custom_call.1} parent=39 // pred_region
          %s1138 = sand.u32 %s103, 1
          %s1139 = scalar_lea.sflag [#allocation3], %s1138
          %s1140 = sand.u32 %s103, 1
          %s1141 = smul.addr %s1140, 64
          %s1142 = scalar_lea.vmem [#allocation2], %s1141
          %1143 = dma.done %s1139, 1024
        $region44: #{tpu_custom_call.1} parent=39 // pred_fallthru
          _
      $region40: #{tpu_custom_call.1} parent=5 // pred_fallthru
        _
    $region6: #{tpu_custom_call.1} parent=1 // loop_footer
      %s16 = sadd.s32 1, %s12
    $region7: #{tpu_custom_call.1} parent=1 // loop_footer_branch
      %11 = sbr.rel target = $region3
    $region8: #{tpu_custom_call.1} parent=1 // loop_exit
      _
    %1144 = vsyncpa [#allocation3], 1
    %s1145 = scalar_lea.sflag [#allocation3], 1
    %1146 = vsyncpa %s1145, 1

</llo_original>
